<compile_context>
chip_gen: v7x
topology: tpu7x:2x2x1
jax: 0.10.0
libtpu: 0.0.40
codegen_flags: <defaults>
</compile_context>

<pallas_src>
import jax
import jax.numpy as jnp
from jax.experimental import pallas as pl
from jax.experimental.pallas import tpu as pltpu

NEG_SLOPE = 0.01  # PyTorch nn.LeakyReLU default


def _leaky_relu(x):
    return jnp.where(x > 0, x, NEG_SLOPE * x)


def _round_up(n, m):
    return ((n + m - 1) // m) * m


def dqn_kernel(x_ref, w1_ref, b1_ref, w2_ref, b2_ref, w3_ref, b3_ref, o_ref):
    """One batch tile. x_ref: [obs, TB], o_ref: [act, TB].

    Weights are [out, in]; biases [out, 1] broadcast over lanes.
    All math in f32 (MXU matmul with f32 accumulation, VPU bias/LeakyReLU).
    """
    x = x_ref[...]                                                # [obs, TB]

    # Layer 1: [20, obs] @ [obs, TB] -> [20, TB]
    h1 = jnp.dot(w1_ref[...], x, preferred_element_type=jnp.float32)
    h1 = _leaky_relu(h1 + b1_ref[...])

    # Layer 2: [10, 20] @ [20, TB] -> [10, TB]
    h2 = jnp.dot(w2_ref[...], h1, preferred_element_type=jnp.float32)
    h2 = _leaky_relu(h2 + b2_ref[...])

    # Layer 3: [act, 10] @ [10, TB] -> [act, TB]  (lane-dense store)
    o_ref[...] = (jnp.dot(w3_ref[...], h2, preferred_element_type=jnp.float32)
                  + b3_ref[...])


def dqn_forward_feature_major(xt, params, *, block_b=65536):
    """Core entry point. xt: [obshape, B] f32 (batch on lanes).

    Returns [actspace, B] f32. No transposes, no padding copies: ragged
    last batch tiles are handled by Pallas' boundary-block masking.
    """
    assert block_b % 128 == 0, "block_b must be a multiple of 128 (lane width)"

    w1, b1 = params["w1"], params["b1"]
    w2, b2 = params["w2"], params["b2"]
    w3, b3 = params["w3"], params["b3"]

    obs, B = xt.shape
    h1_dim, h2_dim = w1.shape[0], w2.shape[0]
    actspace = w3.shape[0]

    if B <= 256:
        # Tiny batch: one full-extent tile, no grid overhead.
        tb, n_blocks = B, 1
    else:
        # >= 2 grid steps so v7x's two TensorCores both get work; cap the
        # tile at block_b lanes (keeps double-buffered x/out well under the
        # default scoped VMEM on every generation).
        tb = min(block_b, _round_up(pl.cdiv(B, 2), 128))
        n_blocks = pl.cdiv(B, tb)

    def const_spec(shape):
        # Same block every grid step -> weights/biases stay resident in VMEM.
        return pl.BlockSpec(shape, lambda i: tuple(0 for _ in shape))

    flops = 2 * B * (obs * h1_dim + h1_dim * h2_dim + h2_dim * actspace)
    weight_bytes = sum(int(a.size) * a.dtype.itemsize
                       for a in (w1, b1, w2, b2, w3, b3))
    cost = pl.CostEstimate(
        flops=flops,
        transcendentals=0,
        bytes_accessed=B * (obs + actspace) * 4 + weight_bytes,
    )

    return pl.pallas_call(
        dqn_kernel,
        out_shape=jax.ShapeDtypeStruct((actspace, B), jnp.float32),
        grid=(n_blocks,),
        in_specs=[
            pl.BlockSpec((obs, tb), lambda i: (0, i)),   # streamed batch tiles
            const_spec(w1.shape), const_spec(b1.shape),
            const_spec(w2.shape), const_spec(b2.shape),
            const_spec(w3.shape), const_spec(b3.shape),
        ],
        out_specs=pl.BlockSpec((actspace, tb), lambda i: (0, i)),
        compiler_params=pltpu.CompilerParams(
            dimension_semantics=("parallel",)),   # shard batch tiles over TCs
        cost_estimate=cost,
    )(xt, w1, b1, w2, b2, w3, b3)


def dqn_forward(x, params, *, block_b=65536):
    """PyTorch-compatible interface: x [B, obshape] f32 -> [B, actspace] f32."""
    out_t = dqn_forward_feature_major(x.T, params, block_b=block_b)
    return out_t.T


def init_params(key, obshape, actspace):
    """Deterministic synthetic init (PyTorch-like uniform fan-in scaling).

    Weights in PyTorch layout [out, in]; biases as [out, 1]."""
    dims = [(obshape, 20), (20, 10), (10, actspace)]
    params = {}
    for i, (fan_in, fan_out) in enumerate(dims, start=1):
        key, kw, kb = jax.random.split(key, 3)
        bound = 1.0 / jnp.sqrt(jnp.float32(fan_in))
        params[f"w{i}"] = jax.random.uniform(
            kw, (fan_out, fan_in), jnp.float32, -bound, bound)
        params[f"b{i}"] = jax.random.uniform(
            kb, (fan_out, 1), jnp.float32, -bound, bound)
    return params


def reference_forward(x, params):
    """Plain-JAX reference matching PyTorch semantics (f32 throughout)."""
    h = x @ params["w1"].T + params["b1"][:, 0]
    h = jnp.where(h > 0, h, NEG_SLOPE * h)
    h = h @ params["w2"].T + params["b2"][:, 0]
    h = jnp.where(h > 0, h, NEG_SLOPE * h)
    return h @ params["w3"].T + params["b3"][:, 0]


if __name__ == "__main__":
    # CartPole-like sizes: obshape=4, actspace=2.
    OBSHAPE, ACTSPACE = 4, 2

    key = jax.random.PRNGKey(0)
    key, kx = jax.random.split(key)
    params = init_params(key, OBSHAPE, ACTSPACE)

    # 1) Small batch (single full-extent tile) — exact f32 check,
    #    batch-major PyTorch-style interface.
    B = 8
    x = jax.random.normal(kx, (B, OBSHAPE), jnp.float32)
    out = jax.block_until_ready(dqn_forward(x, params))
    ref = reference_forward(x, params)
    assert out.shape == (B, ACTSPACE)
    assert jnp.allclose(out, ref, atol=1e-5, rtol=1e-5), (
        f"small-batch mismatch: max abs err {jnp.max(jnp.abs(out - ref))}")

    # 2) Larger non-multiple batch: exercises the 2-step batch grid, the
    #    ragged boundary tile (no wrapper-side padding), resident weights
    #    and the feature-major entry point. Still pure f32 -> tight check.
    B2 = 1000
    key, kx2 = jax.random.split(key)
    x2 = jax.random.normal(kx2, (B2, OBSHAPE), jnp.float32)
    out2_t = jax.block_until_ready(
        dqn_forward_feature_major(x2.T, params, block_b=512))
    out2 = out2_t.T
    ref2 = reference_forward(x2, params)
    assert out2.shape == (B2, ACTSPACE)
    assert jnp.allclose(out2, ref2, atol=1e-4, rtol=1e-4), (
        f"large-batch mismatch: max abs err {jnp.max(jnp.abs(out2 - ref2))}")

    print("KERNEL_OK")
</pallas_src>

<mosaic_0001>
module attributes {stable_mosaic.version = 11 : i64} {
  func.func @dqn_kernel(%arg0: i32, %arg1: memref<4x8xf32, #tpu.memory_space<vmem>>, %arg2: memref<20x4xf32, #tpu.memory_space<vmem>>, %arg3: memref<20x1xf32, #tpu.memory_space<vmem>>, %arg4: memref<10x20xf32, #tpu.memory_space<vmem>>, %arg5: memref<10x1xf32, #tpu.memory_space<vmem>>, %arg6: memref<2x10xf32, #tpu.memory_space<vmem>>, %arg7: memref<2x1xf32, #tpu.memory_space<vmem>>, %arg8: memref<2x8xf32, #tpu.memory_space<vmem>>) attributes {dimension_semantics = [#tpu.dimension_semantics<parallel>], iteration_bounds = array<i64: 1>, scalar_prefetch = 0 : i64, scratch_operands = 0 : i64, tpu.core_type = #tpu.core_type<tc>, window_params = [{transform_indices = @transform_0, window_bounds = array<i64: 4, 8>}, {pipeline_mode = #tpu.pipeline_mode<synchronous>, transform_indices = @transform_1, window_bounds = array<i64: 20, 4>}, {pipeline_mode = #tpu.pipeline_mode<synchronous>, transform_indices = @transform_2, window_bounds = array<i64: 20, 1>}, {pipeline_mode = #tpu.pipeline_mode<synchronous>, transform_indices = @transform_3, window_bounds = array<i64: 10, 20>}, {pipeline_mode = #tpu.pipeline_mode<synchronous>, transform_indices = @transform_4, window_bounds = array<i64: 10, 1>}, {pipeline_mode = #tpu.pipeline_mode<synchronous>, transform_indices = @transform_5, window_bounds = array<i64: 2, 10>}, {pipeline_mode = #tpu.pipeline_mode<synchronous>, transform_indices = @transform_6, window_bounds = array<i64: 2, 1>}, {transform_indices = @transform_7, window_bounds = array<i64: 2, 8>}]} {
    %c0 = arith.constant 0 : index
    %c0_0 = arith.constant 0 : index
    %0 = vector.load %arg1[%c0, %c0_0] : memref<4x8xf32, #tpu.memory_space<vmem>>, vector<4x8xf32>
    %c0_1 = arith.constant 0 : index
    %c0_2 = arith.constant 0 : index
    %1 = vector.load %arg2[%c0_1, %c0_2] : memref<20x4xf32, #tpu.memory_space<vmem>>, vector<20x4xf32>
    %cst = arith.constant dense<0.000000e+00> : vector<20x8xf32>
    %2 = tpu.matmul %1, %0, %cst {dimension_numbers = #tpu.dot_dimension_numbers<[1], [0], [0], [1], [0, 0, 1, 1], [], []>} : vector<20x4xf32>, vector<4x8xf32>, vector<20x8xf32> -> vector<20x8xf32>
    %c0_3 = arith.constant 0 : index
    %c0_4 = arith.constant 0 : index
    %3 = vector.load %arg3[%c0_3, %c0_4] : memref<20x1xf32, #tpu.memory_space<vmem>>, vector<20x1xf32>
    %4 = vector.broadcast %3 : vector<20x1xf32> to vector<20x8xf32>
    %5 = arith.addf %2, %4 : vector<20x8xf32>
    %cst_5 = arith.constant 0.000000e+00 : f32
    %6 = vector.broadcast %cst_5 : f32 to vector<20x8xf32>
    %7 = arith.cmpf ogt, %5, %6 : vector<20x8xf32>
    %cst_6 = arith.constant 0.00999999977 : f32
    %8 = vector.broadcast %cst_6 : f32 to vector<20x8xf32>
    %9 = arith.mulf %8, %5 : vector<20x8xf32>
    %10 = arith.select %7, %5, %9 : vector<20x8xi1>, vector<20x8xf32>
    %c0_7 = arith.constant 0 : index
    %c0_8 = arith.constant 0 : index
    %11 = vector.load %arg4[%c0_7, %c0_8] : memref<10x20xf32, #tpu.memory_space<vmem>>, vector<10x20xf32>
    %cst_9 = arith.constant dense<0.000000e+00> : vector<10x8xf32>
    %12 = tpu.matmul %11, %10, %cst_9 {dimension_numbers = #tpu.dot_dimension_numbers<[1], [0], [0], [1], [0, 0, 1, 1], [], []>} : vector<10x20xf32>, vector<20x8xf32>, vector<10x8xf32> -> vector<10x8xf32>
    %c0_10 = arith.constant 0 : index
    %c0_11 = arith.constant 0 : index
    %13 = vector.load %arg5[%c0_10, %c0_11] : memref<10x1xf32, #tpu.memory_space<vmem>>, vector<10x1xf32>
    %14 = vector.broadcast %13 : vector<10x1xf32> to vector<10x8xf32>
    %15 = arith.addf %12, %14 : vector<10x8xf32>
    %cst_12 = arith.constant 0.000000e+00 : f32
    %16 = vector.broadcast %cst_12 : f32 to vector<10x8xf32>
    %17 = arith.cmpf ogt, %15, %16 : vector<10x8xf32>
    %cst_13 = arith.constant 0.00999999977 : f32
    %18 = vector.broadcast %cst_13 : f32 to vector<10x8xf32>
    %19 = arith.mulf %18, %15 : vector<10x8xf32>
    %20 = arith.select %17, %15, %19 : vector<10x8xi1>, vector<10x8xf32>
    %c0_14 = arith.constant 0 : index
    %c0_15 = arith.constant 0 : index
    %21 = vector.load %arg6[%c0_14, %c0_15] : memref<2x10xf32, #tpu.memory_space<vmem>>, vector<2x10xf32>
    %cst_16 = arith.constant dense<0.000000e+00> : vector<2x8xf32>
    %22 = tpu.matmul %21, %20, %cst_16 {dimension_numbers = #tpu.dot_dimension_numbers<[1], [0], [0], [1], [0, 0, 1, 1], [], []>} : vector<2x10xf32>, vector<10x8xf32>, vector<2x8xf32> -> vector<2x8xf32>
    %c0_17 = arith.constant 0 : index
    %c0_18 = arith.constant 0 : index
    %23 = vector.load %arg7[%c0_17, %c0_18] : memref<2x1xf32, #tpu.memory_space<vmem>>, vector<2x1xf32>
    %24 = vector.broadcast %23 : vector<2x1xf32> to vector<2x8xf32>
    %25 = arith.addf %22, %24 : vector<2x8xf32>
    %c0_19 = arith.constant 0 : index
    %c0_20 = arith.constant 0 : index
    %26 = vector.load %arg8[%c0_19, %c0_20] : memref<2x8xf32, #tpu.memory_space<vmem>>, vector<2x8xf32>
    tpu.vector_store %arg8[%c0_19, %c0_20], %25 {strides = array<i32>} : memref<2x8xf32, #tpu.memory_space<vmem>>, vector<2x8xf32>,
    return
  }
  func.func @transform_0(%arg0: i32) -> (i32, i32) {
    %c0_i32 = arith.constant 0 : i32
    %c0_i32_0 = arith.constant 0 : i32
    return %c0_i32, %arg0 : i32, i32
  }
  func.func @transform_1(%arg0: i32) -> (i32, i32) {
    %c0_i32 = arith.constant 0 : i32
    %c0_i32_0 = arith.constant 0 : i32
    %c0_i32_1 = arith.constant 0 : i32
    return %c0_i32, %c0_i32_0 : i32, i32
  }
  func.func @transform_2(%arg0: i32) -> (i32, i32) {
    %c0_i32 = arith.constant 0 : i32
    %c0_i32_0 = arith.constant 0 : i32
    %c0_i32_1 = arith.constant 0 : i32
    return %c0_i32, %c0_i32_0 : i32, i32
  }
  func.func @transform_3(%arg0: i32) -> (i32, i32) {
    %c0_i32 = arith.constant 0 : i32
    %c0_i32_0 = arith.constant 0 : i32
    %c0_i32_1 = arith.constant 0 : i32
    return %c0_i32, %c0_i32_0 : i32, i32
  }
  func.func @transform_4(%arg0: i32) -> (i32, i32) {
    %c0_i32 = arith.constant 0 : i32
    %c0_i32_0 = arith.constant 0 : i32
    %c0_i32_1 = arith.constant 0 : i32
    return %c0_i32, %c0_i32_0 : i32, i32
  }
  func.func @transform_5(%arg0: i32) -> (i32, i32) {
    %c0_i32 = arith.constant 0 : i32
    %c0_i32_0 = arith.constant 0 : i32
    %c0_i32_1 = arith.constant 0 : i32
    return %c0_i32, %c0_i32_0 : i32, i32
  }
  func.func @transform_6(%arg0: i32) -> (i32, i32) {
    %c0_i32 = arith.constant 0 : i32
    %c0_i32_0 = arith.constant 0 : i32
    %c0_i32_1 = arith.constant 0 : i32
    return %c0_i32, %c0_i32_0 : i32, i32
  }
  func.func @transform_7(%arg0: i32) -> (i32, i32) {
    %c0_i32 = arith.constant 0 : i32
    %c0_i32_0 = arith.constant 0 : i32
    return %c0_i32, %arg0 : i32, i32
  }
}

</mosaic_0001>

<llo_original>
// kernel: tpu_custom_call.1
$region0: #{tpu_custom_call.1}
  #allocation0 [shape = 'u32[]', space=smem, size = 0x4, offset = 0x4, fixed_abs, tag = 'smem constant byte address 0x4 - core index']
  #allocation1 [shape = 'u32[144,128]{1,0:T(1,128)}', space=vmem, size = 0x12000, scoped, tag = 'internal scratch']
  %s0 = inlined_call_operand.vmem [shape: f32[4,8], index: 0, kind: input, shape index: {}]
  %s1 = inlined_call_operand.vmem [shape: f32[20,4], index: 1, kind: input, shape index: {}]
  %s2 = inlined_call_operand.vmem [shape: f32[20,1], index: 2, kind: input, shape index: {}]
  %s3 = inlined_call_operand.vmem [shape: f32[10,20], index: 3, kind: input, shape index: {}]
  %s4 = inlined_call_operand.vmem [shape: f32[10,1], index: 4, kind: input, shape index: {}]
  %s5 = inlined_call_operand.vmem [shape: f32[2,10], index: 5, kind: input, shape index: {}]
  %s6 = inlined_call_operand.vmem [shape: f32[2,1], index: 6, kind: input, shape index: {}]
  %s7 = inlined_call_operand.hbm [shape: f32[2,8], index: 7, kind: output, shape index: {}]
  %s8 = sld [smem:[#allocation0]]
  $region38: #{tpu_custom_call.1} parent=0
    _
  %s10 = ssub.s32 1, %s8
  %s11 = scalar_select 0, %s10, %s8
  $region1: #{tpu_custom_call.1} parent=0
    #allocation2 [shape = 'u8[1024]{0}', space=vmem, size = 0x400, scoped, tag = 'output window, operand 0, single buffered']
    #allocation3 [shape = 's32[1]{0}', space=sflag, size = 0x4, scoped, tag = 'scoped memory for tpu_custom_call.1']
    %12 = vsyncpa [#allocation3], 0
    // Predicated region
    $region2: #{tpu_custom_call.1} parent=1 // pred_check
      _
    $region3: #{tpu_custom_call.1} parent=1 // pred_check_branch
      %14 = sbr.rel (0) target = $region5
    $region4: #{tpu_custom_call.1} parent=1 // pred_region
      _
    $region5: #{tpu_custom_call.1} parent=1 // pred_fallthru
      _
    // Predicated region
    $region6: #{tpu_custom_call.1} parent=1 // pred_check
      _
    $region7: #{tpu_custom_call.1} parent=1 // pred_check_branch
      %16 = sbr.rel (0) target = $region9
    $region8: #{tpu_custom_call.1} parent=1 // pred_region
      _
    $region9: #{tpu_custom_call.1} parent=1 // pred_fallthru
      _
    // Predicated region
    $region10: #{tpu_custom_call.1} parent=1 // pred_check
      _
    $region11: #{tpu_custom_call.1} parent=1 // pred_check_branch
      %18 = sbr.rel (0) target = $region13
    $region12: #{tpu_custom_call.1} parent=1 // pred_region
      _
    $region13: #{tpu_custom_call.1} parent=1 // pred_fallthru
      _
    // Predicated region
    $region14: #{tpu_custom_call.1} parent=1 // pred_check
      _
    $region15: #{tpu_custom_call.1} parent=1 // pred_check_branch
      %20 = sbr.rel (0) target = $region17
    $region16: #{tpu_custom_call.1} parent=1 // pred_region
      _
    $region17: #{tpu_custom_call.1} parent=1 // pred_fallthru
      _
    // Predicated region
    $region18: #{tpu_custom_call.1} parent=1 // pred_check
      _
    $region19: #{tpu_custom_call.1} parent=1 // pred_check_branch
      %22 = sbr.rel (0) target = $region21
    $region20: #{tpu_custom_call.1} parent=1 // pred_region
      _
    $region21: #{tpu_custom_call.1} parent=1 // pred_fallthru
      _
    // Predicated region
    $region22: #{tpu_custom_call.1} parent=1 // pred_check
      _
    $region23: #{tpu_custom_call.1} parent=1 // pred_check_branch
      %24 = sbr.rel (0) target = $region25
    $region24: #{tpu_custom_call.1} parent=1 // pred_region
      _
    $region25: #{tpu_custom_call.1} parent=1 // pred_fallthru
      _
    // Predicated region
    $region26: #{tpu_custom_call.1} parent=1 // pred_check
      _
    $region27: #{tpu_custom_call.1} parent=1 // pred_check_branch
      %26 = sbr.rel (0) target = $region29
    $region28: #{tpu_custom_call.1} parent=1 // pred_region
      _
    $region29: #{tpu_custom_call.1} parent=1 // pred_fallthru
      _
    %v27 = vld [vmem:[%s0] sm:$0xf]
    %v28 = vld [vmem:[%s1] sm:$0xff]
    %v29 = vld [vmem:[%s1 + $0x8] sm:$0xff]
    %v30 = vld [vmem:[%s1 + $0x10] sm:$0xf]
    %v31 = vld [vmem:[%s2] sm:$0xff]
    %v32 = vld [vmem:[%s2 + $0x8] sm:$0xff]
    %v33 = vld [vmem:[%s2 + $0x10] sm:$0xf]
    %35 = vset.pattern.permute.xlu0 0
    %36 = vperm.xlu0 %35, %v31
    %v37 = vpop.permute.xlu0 %36
    %40 = vset.pattern.permute.xlu0 0
    %41 = vperm.xlu0 %40, %v32
    %v42 = vpop.permute.xlu0 %41
    %45 = vset.pattern.permute.xlu0 0
    %46 = vperm.xlu0 %45, %v33
    %v47 = vpop.permute.xlu0 %46
    %vm49 = vcmask 31744
    %v51 = vsel %vm49, %v28, 0
    %v54 = vsel %vm49, %v29, 0
    %v57 = vsel %vm49, %v30, 0
    %vm59 = vcmask 1043456
    %v61 = vsel %vm59, %v27, 0
    %63 = vmatprep.subr.mxu0 0.0
    %64 = vmatpush1.msra.mxu0 %v61
    %65 = vmatprep.subr.mxu0 0.0
    %66 = vmatpush1.msra.mxu0 0.0
    %67 = vmatprep.subr.mxu0 0.0
    %68 = vmatpush1.msra.mxu0 0.0
    %69 = vmatprep.subr.mxu0 0.0
    %70 = vmatpush1.msra.mxu0 0.0
    %71 = vmatprep.subr.mxu0 0.0
    %72 = vmatpush1.msra.mxu0 0.0
    %73 = vmatprep.subr.mxu0 0.0
    %74 = vmatpush1.msra.mxu0 0.0
    %75 = vmatprep.subr.mxu0 0.0
    %76 = vmatpush1.msra.mxu0 0.0
    %77 = vmatprep.subr.mxu0 0.0
    %78 = vmatpush1.msra.mxu0 0.0
    %79 = vmatprep.subr.mxu0 0.0
    %80 = vmatpush1.msra.mxu0 0.0
    %81 = vmatprep.subr.mxu0 0.0
    %82 = vmatpush1.msra.mxu0 0.0
    %83 = vmatprep.subr.mxu0 0.0
    %84 = vmatpush1.msra.mxu0 0.0
    %85 = vmatprep.subr.mxu0 0.0
    %86 = vmatpush1.msra.mxu0 0.0
    %87 = vmatprep.subr.mxu0 0.0
    %88 = vmatpush1.msra.mxu0 0.0
    %89 = vmatprep.subr.mxu0 0.0
    %90 = vmatpush1.msra.mxu0 0.0
    %91 = vmatprep.subr.mxu0 0.0
    %92 = vmatpush1.msra.mxu0 0.0
    %93 = vmatprep.subr.mxu0 0.0
    %94 = vmatpush1.msra.mxu0 0.0
    %95 = vmatprep.subr.mxu0 0.0
    %96 = vmatpush1.msra.mxu0 0.0
    %97 = vmatprep.subr.mxu0 0.0
    %98 = vmatpush1.msra.mxu0 0.0
    %99 = vmatprep.subr.mxu0 0.0
    %100 = vmatpush1.msra.mxu0 0.0
    %101 = vmatprep.subr.mxu0 0.0
    %102 = vmatpush1.msra.mxu0 0.0
    %103 = vmatprep.subr.mxu0 0.0
    %104 = vmatpush1.msra.mxu0 0.0
    %105 = vmatprep.subr.mxu0 0.0
    %106 = vmatpush1.msra.mxu0 0.0
    %107 = vmatprep.subr.mxu0 0.0
    %108 = vmatpush1.msra.mxu0 0.0
    %109 = vmatprep.subr.mxu0 0.0
    %110 = vmatpush1.msra.mxu0 0.0
    %111 = vmatprep.subr.mxu0 0.0
    %112 = vmatpush1.msra.mxu0 0.0
    %113 = vmatprep.subr.mxu0 0.0
    %114 = vmatpush1.msra.mxu0 0.0
    %115 = vmatprep.subr.mxu0 0.0
    %116 = vmatpush1.msra.mxu0 0.0
    %117 = vmatprep.subr.mxu0 0.0
    %118 = vmatpush1.msra.mxu0 0.0
    %119 = vmatprep.subr.mxu0 0.0
    %120 = vmatpush1.msra.mxu0 0.0
    %121 = vmatprep.subr.mxu0 0.0
    %122 = vmatpush1.msra.mxu0 0.0
    %123 = vmatprep.subr.mxu0 0.0
    %124 = vmatpush1.msra.mxu0 0.0
    %125 = vmatprep.subr.mxu0 0.0
    %126 = vmatpush1.msra.mxu0 0.0
    %127 = vmatprep.mubr.f32.mxu0 0.0
    %128 = vmatmul.mubr.f32.gmra.mrb[0].mxu0 %v51
    %v129 = vpop.f32.mrb[0].mxu0
    %v130 = vadd.f32 %v37, %v129
    %v131 = vpop.f32.mrb[0].mxu0
    %132 = vmatprep.mubr.f32.mxu0 0.0
    %133 = vmatmul.mubr.f32.gmra.mrb[0].mxu0 %v54
    %v134 = vpop.f32.mrb[0].mxu0
    %v135 = vadd.f32 %v42, %v134
    %v136 = vpop.f32.mrb[0].mxu0
    %137 = vmatprep.mubr.f32.mxu0 0.0
    %138 = vmatmul.mubr.f32.gmra.mrb[0].mxu0 %v57
    %v139 = vpop.f32.mrb[0].mxu0
    %v140 = vadd.f32 %v47, %v139
    %v141 = vpop.f32.mrb[0].mxu0
    %142 = vdwg.mxu0
    %vm143 = vcmp.gt.f32.partialorder %v130, 0.0
    %vm144 = vcmp.gt.f32.partialorder %v135, 0.0
    %vm145 = vcmp.gt.f32.partialorder %v140, 0.0
    %v146 = vmul.f32 %v130, 0.01
    %v147 = vmul.f32 %v135, 0.01
    %v148 = vmul.f32 %v140, 0.01
    %v149 = vsel %vm143, %v130, %v146
    %v150 = vsel %vm144, %v135, %v147
    %v151 = vsel %vm145, %v140, %v148
    %v152 = vld [vmem:[%s3] sm:$0xff]
    %v153 = vld [vmem:[%s3 + $0x8] sm:$0x3]
    %v154 = vld [vmem:[%s4] sm:$0xff]
    %v155 = vld [vmem:[%s4 + $0x8] sm:$0x3]
    %157 = vset.pattern.permute.xlu0 0
    %158 = vperm.xlu0 %157, %v154
    %v159 = vpop.permute.xlu0 %158
    %162 = vset.pattern.permute.xlu0 0
    %163 = vperm.xlu0 %162, %v155
    %v164 = vpop.permute.xlu0 %163
    %vm166 = vcmask 162816
    %v168 = vsel %vm166, %v152, 0
    %v171 = vsel %vm166, %v153, 0
    %v174 = vsel %vm59, %v151, 0
    %176 = vmatprep.subr.mxu0 0.0
    %177 = vmatpush1.msra.mxu0 %v149
    %178 = vmatprep.subr.mxu0 0.0
    %179 = vmatpush1.msra.mxu0 %v150
    %180 = vmatprep.subr.mxu0 0.0
    %181 = vmatpush1.msra.mxu0 %v174
    %182 = vmatprep.subr.mxu0 0.0
    %183 = vmatpush1.msra.mxu0 0.0
    %184 = vmatprep.subr.mxu0 0.0
    %185 = vmatpush1.msra.mxu0 0.0
    %186 = vmatprep.subr.mxu0 0.0
    %187 = vmatpush1.msra.mxu0 0.0
    %188 = vmatprep.subr.mxu0 0.0
    %189 = vmatpush1.msra.mxu0 0.0
    %190 = vmatprep.subr.mxu0 0.0
    %191 = vmatpush1.msra.mxu0 0.0
    %192 = vmatprep.subr.mxu0 0.0
    %193 = vmatpush1.msra.mxu0 0.0
    %194 = vmatprep.subr.mxu0 0.0
    %195 = vmatpush1.msra.mxu0 0.0
    %196 = vmatprep.subr.mxu0 0.0
    %197 = vmatpush1.msra.mxu0 0.0
    %198 = vmatprep.subr.mxu0 0.0
    %199 = vmatpush1.msra.mxu0 0.0
    %200 = vmatprep.subr.mxu0 0.0
    %201 = vmatpush1.msra.mxu0 0.0
    %202 = vmatprep.subr.mxu0 0.0
    %203 = vmatpush1.msra.mxu0 0.0
    %204 = vmatprep.subr.mxu0 0.0
    %205 = vmatpush1.msra.mxu0 0.0
    %206 = vmatprep.subr.mxu0 0.0
    %207 = vmatpush1.msra.mxu0 0.0
    %208 = vmatprep.subr.mxu0 0.0
    %209 = vmatpush1.msra.mxu0 0.0
    %210 = vmatprep.subr.mxu0 0.0
    %211 = vmatpush1.msra.mxu0 0.0
    %212 = vmatprep.subr.mxu0 0.0
    %213 = vmatpush1.msra.mxu0 0.0
    %214 = vmatprep.subr.mxu0 0.0
    %215 = vmatpush1.msra.mxu0 0.0
    %216 = vmatprep.subr.mxu0 0.0
    %217 = vmatpush1.msra.mxu0 0.0
    %218 = vmatprep.subr.mxu0 0.0
    %219 = vmatpush1.msra.mxu0 0.0
    %220 = vmatprep.subr.mxu0 0.0
    %221 = vmatpush1.msra.mxu0 0.0
    %222 = vmatprep.subr.mxu0 0.0
    %223 = vmatpush1.msra.mxu0 0.0
    %224 = vmatprep.subr.mxu0 0.0
    %225 = vmatpush1.msra.mxu0 0.0
    %226 = vmatprep.subr.mxu0 0.0
    %227 = vmatpush1.msra.mxu0 0.0
    %228 = vmatprep.subr.mxu0 0.0
    %229 = vmatpush1.msra.mxu0 0.0
    %230 = vmatprep.subr.mxu0 0.0
    %231 = vmatpush1.msra.mxu0 0.0
    %232 = vmatprep.subr.mxu0 0.0
    %233 = vmatpush1.msra.mxu0 0.0
    %234 = vmatprep.subr.mxu0 0.0
    %235 = vmatpush1.msra.mxu0 0.0
    %236 = vmatprep.subr.mxu0 0.0
    %237 = vmatpush1.msra.mxu0 0.0
    %238 = vmatprep.subr.mxu0 0.0
    %239 = vmatpush1.msra.mxu0 0.0
    %240 = vmatprep.mubr.f32.mxu0 0.0
    %241 = vmatmul.mubr.f32.gmra.mrb[0].mxu0 %v168
    %v242 = vpop.f32.mrb[0].mxu0
    %v243 = vadd.f32 %v159, %v242
    %v244 = vpop.f32.mrb[0].mxu0
    %245 = vmatprep.mubr.f32.mxu0 0.0
    %246 = vmatmul.mubr.f32.gmra.mrb[0].mxu0 %v171
    %v247 = vpop.f32.mrb[0].mxu0
    %v248 = vadd.f32 %v164, %v247
    %v249 = vpop.f32.mrb[0].mxu0
    %250 = vdwg.mxu0
    %vm251 = vcmp.gt.f32.partialorder %v243, 0.0
    %vm252 = vcmp.gt.f32.partialorder %v248, 0.0
    %v253 = vmul.f32 %v243, 0.01
    %v254 = vmul.f32 %v248, 0.01
    %v255 = vsel %vm251, %v243, %v253
    %v256 = vsel %vm252, %v248, %v254
    %v257 = vld [vmem:[%s5] sm:$0x3]
    %v258 = vld [vmem:[%s6] sm:$0x3]
    %260 = vset.pattern.permute.xlu0 0
    %261 = vperm.xlu0 %260, %v258
    %v262 = vpop.permute.xlu0 %261
    %vm264 = vcmask 80896
    %v266 = vsel %vm264, %v257, 0
    %vm268 = vcmask 1041408
    %v270 = vsel %vm268, %v256, 0
    %272 = vmatprep.subr.mxu0 0.0
    %273 = vmatpush1.msra.mxu0 %v255
    %274 = vmatprep.subr.mxu0 0.0
    %275 = vmatpush1.msra.mxu0 %v270
    %276 = vmatprep.subr.mxu0 0.0
    %277 = vmatpush1.msra.mxu0 0.0
    %278 = vmatprep.subr.mxu0 0.0
    %279 = vmatpush1.msra.mxu0 0.0
    %280 = vmatprep.subr.mxu0 0.0
    %281 = vmatpush1.msra.mxu0 0.0
    %282 = vmatprep.subr.mxu0 0.0
    %283 = vmatpush1.msra.mxu0 0.0
    %284 = vmatprep.subr.mxu0 0.0
    %285 = vmatpush1.msra.mxu0 0.0
    %286 = vmatprep.subr.mxu0 0.0
    %287 = vmatpush1.msra.mxu0 0.0
    %288 = vmatprep.subr.mxu0 0.0
    %289 = vmatpush1.msra.mxu0 0.0
    %290 = vmatprep.subr.mxu0 0.0
    %291 = vmatpush1.msra.mxu0 0.0
    %292 = vmatprep.subr.mxu0 0.0
    %293 = vmatpush1.msra.mxu0 0.0
    %294 = vmatprep.subr.mxu0 0.0
    %295 = vmatpush1.msra.mxu0 0.0
    %296 = vmatprep.subr.mxu0 0.0
    %297 = vmatpush1.msra.mxu0 0.0
    %298 = vmatprep.subr.mxu0 0.0
    %299 = vmatpush1.msra.mxu0 0.0
    %300 = vmatprep.subr.mxu0 0.0
    %301 = vmatpush1.msra.mxu0 0.0
    %302 = vmatprep.subr.mxu0 0.0
    %303 = vmatpush1.msra.mxu0 0.0
    %304 = vmatprep.subr.mxu0 0.0
    %305 = vmatpush1.msra.mxu0 0.0
    %306 = vmatprep.subr.mxu0 0.0
    %307 = vmatpush1.msra.mxu0 0.0
    %308 = vmatprep.subr.mxu0 0.0
    %309 = vmatpush1.msra.mxu0 0.0
    %310 = vmatprep.subr.mxu0 0.0
    %311 = vmatpush1.msra.mxu0 0.0
    %312 = vmatprep.subr.mxu0 0.0
    %313 = vmatpush1.msra.mxu0 0.0
    %314 = vmatprep.subr.mxu0 0.0
    %315 = vmatpush1.msra.mxu0 0.0
    %316 = vmatprep.subr.mxu0 0.0
    %317 = vmatpush1.msra.mxu0 0.0
    %318 = vmatprep.subr.mxu0 0.0
    %319 = vmatpush1.msra.mxu0 0.0
    %320 = vmatprep.subr.mxu0 0.0
    %321 = vmatpush1.msra.mxu0 0.0
    %322 = vmatprep.subr.mxu0 0.0
    %323 = vmatpush1.msra.mxu0 0.0
    %324 = vmatprep.subr.mxu0 0.0
    %325 = vmatpush1.msra.mxu0 0.0
    %326 = vmatprep.subr.mxu0 0.0
    %327 = vmatpush1.msra.mxu0 0.0
    %328 = vmatprep.subr.mxu0 0.0
    %329 = vmatpush1.msra.mxu0 0.0
    %330 = vmatprep.subr.mxu0 0.0
    %331 = vmatpush1.msra.mxu0 0.0
    %332 = vmatprep.subr.mxu0 0.0
    %333 = vmatpush1.msra.mxu0 0.0
    %334 = vmatprep.subr.mxu0 0.0
    %335 = vmatpush1.msra.mxu0 0.0
    %336 = vmatprep.mubr.f32.mxu0 0.0
    %337 = vmatmul.mubr.f32.gmra.mrb[0].mxu0 %v266
    %v338 = vpop.f32.mrb[0].mxu0
    %v339 = vadd.f32 %v262, %v338
    %v340 = vpop.f32.mrb[0].mxu0
    %341 = vdwg.mxu0
    %vm342 = vcmask 58368
    %343 = vst.msk [vmem:[#allocation2] sm:$0x3] %vm342, %v339
    // Predicated region
    $region30: #{tpu_custom_call.1} parent=1 // pred_check
      _
    $region31: #{tpu_custom_call.1} parent=1 // pred_check_branch
      %345 = sbr.rel (0) target = $region33
    $region32: #{tpu_custom_call.1} parent=1 // pred_region
      %s347 = ssub.s32 32, 32
      %348 = vsyncadd [#allocation3], %s347
      %s350 = sshll.u32 [#allocation2], 4
      %s351 = int_to_ptr.vmem [resolvable:$true] %s350
      %353 = dma.vmem_to_hbm [thread:$0]  %s351, 32, %s7, [#allocation3]
    $region33: #{tpu_custom_call.1} parent=1 // pred_fallthru
      _
    // Predicated region
    $region34: #{tpu_custom_call.1} parent=1 // pred_check
      _
    $region35: #{tpu_custom_call.1} parent=1 // pred_check_branch
      %355 = sbr.rel (0) target = $region37
    $region36: #{tpu_custom_call.1} parent=1 // pred_region
      %356 = dma.done [#allocation3], 32
    $region37: #{tpu_custom_call.1} parent=1 // pred_fallthru
      _
    %357 = vsyncpa [#allocation3], 1

</llo_original>
